<compile_context>
chip_gen: v7x
topology: tpu7x:2x2x1
jax: 0.10.0
libtpu: 0.0.40
codegen_flags: <defaults>
</compile_context>

<pallas_src>
import jax
import jax.numpy as jnp
from jax.experimental import pallas as pl
from jax.experimental.pallas import tpu as pltpu


def _round_up(x, m):
    return (x + m - 1) // m * m


def _choose_block_rows(rows, k, ep, out_bytes, *, target=1024, min_steps=2,
                       vmem_budget=12 * 1024 * 1024):
    """Pick the row-tile TM for the flattened (B*N, K) @ (K, Ep) matmul.

    Preferences, in order:
      1. fit the double-buffered pipeline footprint in `vmem_budget`
         (safe under v5e's 16 MiB default scoped VMEM; v6e/v7x have 32 MiB),
      2. keep >= `min_steps` grid steps so v7x's two TensorCores both get
         work from the "parallel" grid axis,
      3. divide `rows` exactly so the wrapper never pads rows (no extra
         output-sized copy for the final slice),
      4. be as large as possible (<= target) to amortize per-step overhead.
    """
    # Per-step footprint: 2x (TM, K) bf16 in, 2x (TM, Ep) out, 2x (K, Ep)
    # bf16 weight, bias.  TODO(synk): single-buffer the resident weight/bias
    # (pipeline_mode=pl.Buffered(1)) to reclaim one (K, Ep) buffer on v5e.
    fixed = 2 * (k * ep * 2 + ep * 4)
    per_row = 2 * (k * 2 + ep * out_bytes)
    tm_vmem = max(8, (vmem_budget - fixed) // per_row)

    cap = min(target, tm_vmem, max(8, _round_up(-(-rows // min_steps), 8)))
    cap = max(8, (cap // 8) * 8)

    if rows <= cap:
        return _round_up(rows, 8)

    # Largest multiple-of-8 divisor of rows that is <= cap (no row padding).
    tm = cap
    while tm >= 8:
        if rows % tm == 0:
            return tm
        tm -= 8
    return cap  # no clean divisor: pad rows in the wrapper


def patch_embed_kernel(x_ref, w_ref, b_ref, o_ref):
    # x_ref: (TM, K)  bf16 rows of flattened patches (one row block)
    # w_ref: (K, Ep)  bf16 flattened conv weight (resident across grid)
    # b_ref: (1, Ep)  f32 conv bias (resident across grid)
    # o_ref: (TM, Ep) output rows (lane-dense, unmasked stores)
    acc = jnp.dot(x_ref[...], w_ref[...], preferred_element_type=jnp.float32)
    o_ref[...] = (acc + b_ref[...]).astype(o_ref.dtype)


def patch_embeddings_forward(pixel_values, conv_w, conv_b, *, patch_size,
                             block_rows=1024, out_dtype=jnp.bfloat16,
                             fuse_patch_extraction=True):
    """PatchEmbeddings.forward.

    pixel_values: (B, C, H, W) float32 (NCHW, like PyTorch)
    conv_w:       (E, C, p, p) Conv2d weight
    conv_b:       (E,)         Conv2d bias
    returns:      (B, N, E) in `out_dtype`, N = (H//p)*(W//p), row-major (h, w)
    """
    B, C, H, W = pixel_values.shape
    p = patch_size
    Hp, Wp = H // p, W // p
    N = Hp * Wp
    K = C * p * p
    E = conv_w.shape[0]
    out_bytes = jnp.dtype(out_dtype).itemsize

    # --- glue (plain JAX): extract non-overlapping patches, row-major (h, w),
    # matching Conv2d(stride=patch) + flatten(2).transpose(1, 2).  Cast to
    # bf16 *before* the transpose so any materialized intermediate is half
    # size and no separate cast pass is needed.  With allow_input_fusion this
    # producer may be fused into the pallas_call operand DMA entirely.
    # TODO(synk): verify with xprof that the input fusion actually happens.
    patches = pixel_values.astype(jnp.bfloat16).reshape(B, C, Hp, p, Wp, p)
    patches = patches.transpose(0, 2, 4, 1, 3, 5).reshape(B * N, K)

    # Flatten conv weight to a (K, E) matmul operand; zero-pad E to lane
    # width so output stores are unmasked / lane-dense.
    Ep = _round_up(E, 128)
    wp = conv_w.astype(jnp.bfloat16).reshape(E, K).T          # (K, E) bf16
    if Ep != E:
        wp = jnp.pad(wp, ((0, 0), (0, Ep - E)))
    bp = jnp.pad(conv_b.astype(jnp.float32), (0, Ep - E)).reshape(1, Ep)

    # Row-tile the flattened (B*N, K) rows.
    rows = B * N
    TM = _choose_block_rows(rows, K, Ep, out_bytes, target=block_rows)
    rows_p = _round_up(rows, TM)
    if rows_p != rows:
        patches = jnp.pad(patches, ((0, rows_p - rows), (0, 0)))

    cost = pl.CostEstimate(
        flops=2 * rows_p * K * Ep,
        bytes_accessed=(rows_p * K * 2 + K * Ep * 2 + Ep * 4
                        + rows_p * Ep * out_bytes),
        transcendentals=0,
    )

    out = pl.pallas_call(
        patch_embed_kernel,
        out_shape=jax.ShapeDtypeStruct((rows_p, Ep), out_dtype),
        grid_spec=pltpu.PrefetchScalarGridSpec(
            num_scalar_prefetch=0,
            grid=(rows_p // TM,),
            in_specs=[
                pl.BlockSpec((TM, K), lambda i: (i, 0)),   # streaming rows
                pl.BlockSpec((K, Ep), lambda i: (0, 0)),   # resident weight
                pl.BlockSpec((1, Ep), lambda i: (0, 0)),   # resident bias
            ],
            out_specs=pl.BlockSpec((TM, Ep), lambda i: (i, 0)),
        ),
        compiler_params=pltpu.CompilerParams(
            dimension_semantics=("parallel",),
            allow_input_fusion=([True, False, False]
                                if fuse_patch_extraction else None),
        ),
        cost_estimate=cost,
    )(patches, wp, bp)

    # Strip row / lane padding (no-op when TM divides rows and E % 128 == 0)
    # and restore (B, N, E).
    return out[:rows, :E].reshape(B, N, E)


def reference_forward(pixel_values, conv_w, conv_b, *, patch_size):
    """Pure-JAX (f32) reference mirroring the PyTorch forward."""
    B, C, H, W = pixel_values.shape
    p = patch_size
    Hp, Wp = H // p, W // p
    N = Hp * Wp
    K = C * p * p
    E = conv_w.shape[0]
    patches = pixel_values.reshape(B, C, Hp, p, Wp, p)
    patches = patches.transpose(0, 2, 4, 1, 3, 5).reshape(B, N, K)
    return patches @ conv_w.reshape(E, K).T + conv_b


if __name__ == "__main__":
    # Small config consistent with the module (defaults: image=64, patch=2,
    # channels=3, embed_dim=256); scaled down for the smoke test.
    B, C, S, p, E = 2, 3, 16, 2, 128
    N = (S // p) * (S // p)

    key = jax.random.PRNGKey(0)
    k0, k1, k2 = jax.random.split(key, 3)
    pixel_values = jax.random.normal(k0, (B, C, S, S), jnp.float32)
    conv_w = jax.random.normal(k1, (E, C, p, p), jnp.float32) * 0.05
    conv_b = jax.random.normal(k2, (E,), jnp.float32) * 0.05

    out = patch_embeddings_forward(pixel_values, conv_w, conv_b, patch_size=p)
    out = jax.block_until_ready(out)

    ref = reference_forward(pixel_values, conv_w, conv_b, patch_size=p)
    assert out.shape == (B, N, E), out.shape
    assert out.dtype == jnp.bfloat16, out.dtype
    # bf16 MXU inputs + bf16 output with f32 accumulation -> loose tolerance.
    assert jnp.allclose(out.astype(jnp.float32), ref, rtol=2e-2, atol=2e-2), \
        "mismatch vs reference"

    print("KERNEL_OK")
</pallas_src>

<mosaic_0001>
module attributes {stable_mosaic.version = 11 : i64} {
  func.func @patch_embed_kernel(%arg0: i32, %arg1: memref<64x12xbf16, #tpu.memory_space<vmem>>, %arg2: memref<12x128xbf16, #tpu.memory_space<vmem>>, %arg3: memref<1x128xf32, #tpu.memory_space<vmem>>, %arg4: memref<64x128xbf16, #tpu.memory_space<vmem>>) attributes {dimension_semantics = [#tpu.dimension_semantics<parallel>], iteration_bounds = array<i64: 2>, scalar_prefetch = 0 : i64, scratch_operands = 0 : i64, tpu.core_type = #tpu.core_type<tc>, window_params = [{transform_indices = @transform_0, window_bounds = array<i64: 64, 12>}, {pipeline_mode = #tpu.pipeline_mode<synchronous>, transform_indices = @transform_1, window_bounds = array<i64: 12, 128>}, {pipeline_mode = #tpu.pipeline_mode<synchronous>, transform_indices = @transform_2, window_bounds = array<i64: 1, 128>}, {transform_indices = @transform_3, window_bounds = array<i64: 64, 128>}]} {
    %c0 = arith.constant 0 : index
    %c0_0 = arith.constant 0 : index
    %0 = vector.load %arg1[%c0, %c0_0] : memref<64x12xbf16, #tpu.memory_space<vmem>>, vector<64x12xbf16>
    %c0_1 = arith.constant 0 : index
    %c0_2 = arith.constant 0 : index
    %1 = vector.load %arg2[%c0_1, %c0_2] : memref<12x128xbf16, #tpu.memory_space<vmem>>, vector<12x128xbf16>
    %cst = arith.constant dense<0.000000e+00> : vector<64x128xf32>
    %2 = tpu.matmul %0, %1, %cst {dimension_numbers = #tpu.dot_dimension_numbers<[1], [0], [0], [1], [0, 0, 1, 1], [], []>} : vector<64x12xbf16>, vector<12x128xbf16>, vector<64x128xf32> -> vector<64x128xf32>
    %c0_3 = arith.constant 0 : index
    %c0_4 = arith.constant 0 : index
    %3 = vector.load %arg3[%c0_3, %c0_4] : memref<1x128xf32, #tpu.memory_space<vmem>>, vector<1x128xf32>
    %4 = vector.broadcast %3 : vector<1x128xf32> to vector<64x128xf32>
    %5 = arith.addf %2, %4 : vector<64x128xf32>
    %6 = arith.truncf %5 : vector<64x128xf32> to vector<64x128xbf16>
    %c0_5 = arith.constant 0 : index
    %c0_6 = arith.constant 0 : index
    %7 = vector.load %arg4[%c0_5, %c0_6] : memref<64x128xbf16, #tpu.memory_space<vmem>>, vector<64x128xbf16>
    tpu.vector_store %arg4[%c0_5, %c0_6], %6 {strides = array<i32>} : memref<64x128xbf16, #tpu.memory_space<vmem>>, vector<64x128xbf16>,
    return
  }
  func.func @transform_0(%arg0: i32) -> (i32, i32) {
    %c0_i32 = arith.constant 0 : i32
    %c0_i32_0 = arith.constant 0 : i32
    return %arg0, %c0_i32 : i32, i32
  }
  func.func @transform_1(%arg0: i32) -> (i32, i32) {
    %c0_i32 = arith.constant 0 : i32
    %c0_i32_0 = arith.constant 0 : i32
    %c0_i32_1 = arith.constant 0 : i32
    return %c0_i32, %c0_i32_0 : i32, i32
  }
  func.func @transform_2(%arg0: i32) -> (i32, i32) {
    %c0_i32 = arith.constant 0 : i32
    %c0_i32_0 = arith.constant 0 : i32
    %c0_i32_1 = arith.constant 0 : i32
    return %c0_i32, %c0_i32_0 : i32, i32
  }
  func.func @transform_3(%arg0: i32) -> (i32, i32) {
    %c0_i32 = arith.constant 0 : i32
    %c0_i32_0 = arith.constant 0 : i32
    return %arg0, %c0_i32 : i32, i32
  }
}

</mosaic_0001>

<llo_original>
// kernel: tpu_custom_call.1
$region0: #{tpu_custom_call.1}
  #allocation0 [shape = 'u32[]', space=smem, size = 0x4, offset = 0x4, fixed_abs, tag = 'smem constant byte address 0x4 - core index']
  #allocation1 [shape = 'u32[144,128]{1,0:T(1,128)}', space=vmem, size = 0x12000, scoped, tag = 'internal scratch']
  %s0 = inlined_call_operand.vmem [shape: bf16[128,12], index: 0, kind: input, shape index: {}]
  %s1 = inlined_call_operand.vmem [shape: bf16[12,128], index: 1, kind: input, shape index: {}]
  %s2 = inlined_call_operand.vmem [shape: f32[1,128], index: 2, kind: input, shape index: {}]
  %s3 = inlined_call_operand.hbm [shape: bf16[128,128], index: 3, kind: output, shape index: {}]
  %s4 = sld [smem:[#allocation0]]
  $region45: #{tpu_custom_call.1} parent=0
    _
  %s6 = ssub.s32 1, %s4
  %s7 = scalar_select 0, %s6, %s4
  $region1: #{tpu_custom_call.1} parent=0
    #allocation2 [shape = 'u8[32768]{0}', space=vmem, size = 0x8000, scoped, tag = 'output window, operand 0']
    #allocation3 [shape = 's32[2]{0}', space=sflag, size = 0x8, scoped, tag = 'scoped memory for tpu_custom_call.1']
    %8 = vsyncpa [#allocation3], 0
    %s9 = scalar_lea.sflag [#allocation3], 1
    %10 = vsyncpa %s9, 0
    loop: start=0, step=1, limit=4
    $region2: #{tpu_custom_call.1} parent=1 // loop_pre_header
      _
    $region3: #{tpu_custom_call.1} parent=1 // loop_header
      %s12 = sphi 0, %s16
      %p13 = scmp.ge.s32.totalorder %s12, 4
      %s22 = sphi 0, %s24
      %s25 = sphi 0, %s22
      %s26 = sphi 0, %s25
      %s42 = sphi 0, %s26
      %s46 = sphi 0, %s46
      %s48 = sphi 0, %s46
      %s49 = sphi 0, %s48
      %s63 = sphi 0, %s49
      %s67 = sphi 0, %s67
      %s69 = sphi 0, %s67
      %s70 = sphi 0, %s69
      %s84 = sphi 0, %s70
      %s90 = sphi 0, %s92
      %s93 = sphi 0, %s90
      %s94 = sphi 0, %s93
      %s110 = sphi 0, %s94
    $region4: #{tpu_custom_call.1} parent=1 // loop_header_branch
      %15 = sbr.rel (%p13) target = $region8
    $region5: #{tpu_custom_call.1} parent=1 // loop_body
      %s17 = ssub.s32 %s12, 1
      %s18 = ssub.s32 %s12, 2
      %s19 = sadd.s32 %s12, 1
      %s20 = ssub.s32 %s12, %s19
      %p21 = scmp.eq.s32.totalorder %s20, 0
      %s23 = sadd.s32 %s22, 1
      %s24 = scalar_select %p21, %s22, %s23
      %p27 = pneg %p21
      %p28 = scmp.eq.s32.totalorder %s12, 1
      %p29 = por %p27, %p28
      %p30 = scmp.ne.s32.totalorder %s22, %s25
      %p31 = scmp.eq.s32.totalorder %s12, 0
      %p32 = por %p30, %p31
      %p33 = scmp.ne.s32.totalorder %s22, %s25
      %p34 = scmp.eq.s32.totalorder %s17, 1
      %p35 = por %p33, %p34
      %p36 = scmp.ne.s32.totalorder %s25, %s26
      %p37 = scmp.eq.s32.totalorder %s17, 0
      %p38 = por %p36, %p37
      %p39 = scmp.ne.s32.totalorder %s25, %s26
      %p40 = scmp.eq.s32.totalorder %s18, 1
      %p41 = por %p39, %p40
      %p43 = scmp.ne.s32.totalorder %s26, %s42
      %p44 = scmp.eq.s32.totalorder %s18, 0
      %p45 = por %p43, %p44
      %s47 = sadd.s32 %s46, 1
      %p50 = scmp.eq.s32.totalorder %s12, 1
      %p51 = scmp.ne.s32.totalorder %s46, %s48
      %p52 = scmp.eq.s32.totalorder %s12, 0
      %p53 = por %p51, %p52
      %p54 = scmp.ne.s32.totalorder %s46, %s48
      %p55 = scmp.eq.s32.totalorder %s17, 1
      %p56 = por %p54, %p55
      %p57 = scmp.ne.s32.totalorder %s48, %s49
      %p58 = scmp.eq.s32.totalorder %s17, 0
      %p59 = por %p57, %p58
      %p60 = scmp.ne.s32.totalorder %s48, %s49
      %p61 = scmp.eq.s32.totalorder %s18, 1
      %p62 = por %p60, %p61
      %p64 = scmp.ne.s32.totalorder %s49, %s63
      %p65 = scmp.eq.s32.totalorder %s18, 0
      %p66 = por %p64, %p65
      %s68 = sadd.s32 %s67, 1
      %p71 = scmp.eq.s32.totalorder %s12, 1
      %p72 = scmp.ne.s32.totalorder %s67, %s69
      %p73 = scmp.eq.s32.totalorder %s12, 0
      %p74 = por %p72, %p73
      %p75 = scmp.ne.s32.totalorder %s67, %s69
      %p76 = scmp.eq.s32.totalorder %s17, 1
      %p77 = por %p75, %p76
      %p78 = scmp.ne.s32.totalorder %s69, %s70
      %p79 = scmp.eq.s32.totalorder %s17, 0
      %p80 = por %p78, %p79
      %p81 = scmp.ne.s32.totalorder %s69, %s70
      %p82 = scmp.eq.s32.totalorder %s18, 1
      %p83 = por %p81, %p82
      %p85 = scmp.ne.s32.totalorder %s70, %s84
      %p86 = scmp.eq.s32.totalorder %s18, 0
      %p87 = por %p85, %p86
      %s88 = ssub.s32 %s12, %s19
      %p89 = scmp.eq.s32.totalorder %s88, 0
      %s91 = sadd.s32 %s90, 1
      %s92 = scalar_select %p89, %s90, %s91
      %p95 = pneg %p89
      %p96 = scmp.eq.s32.totalorder %s12, 1
      %p97 = por %p95, %p96
      %p98 = scmp.ne.s32.totalorder %s90, %s93
      %p99 = scmp.eq.s32.totalorder %s12, 0
      %p100 = por %p98, %p99
      %p101 = scmp.ne.s32.totalorder %s90, %s93
      %p102 = scmp.eq.s32.totalorder %s17, 1
      %p103 = por %p101, %p102
      %p104 = scmp.ne.s32.totalorder %s93, %s94
      %p105 = scmp.eq.s32.totalorder %s17, 0
      %p106 = por %p104, %p105
      %p107 = scmp.ne.s32.totalorder %s93, %s94
      %p108 = scmp.eq.s32.totalorder %s18, 1
      %p109 = por %p107, %p108
      %p111 = scmp.ne.s32.totalorder %s94, %s110
      %p112 = scmp.eq.s32.totalorder %s18, 0
      %p113 = por %p111, %p112
      %p114 = scmp.le.s32.totalorder 1, %s12
      %p115 = scmp.lt.s32.totalorder %s12, 3
      %p116 = pnand %p114, %p115
      %p117 = pneg %p116
      // Predicated region
      $region9: #{tpu_custom_call.1} parent=5 // pred_check
        _
      $region10: #{tpu_custom_call.1} parent=5 // pred_check_branch
        %119 = sbr.rel (%p116) target = $region12
      $region11: #{tpu_custom_call.1} parent=5 // pred_region
        %s120 = ssub.s32 %s12, 1
        // Predicated region
        $region13: #{tpu_custom_call.1} parent=11 // pred_check
          %p121 = pneg %p59
        $region14: #{tpu_custom_call.1} parent=11 // pred_check_branch
          %123 = sbr.rel (%p121) target = $region16
        $region15: #{tpu_custom_call.1} parent=11 // pred_region
          _
        $region16: #{tpu_custom_call.1} parent=11 // pred_fallthru
          _
        // Predicated region
        $region17: #{tpu_custom_call.1} parent=11 // pred_check
          %p124 = pneg %p80
        $region18: #{tpu_custom_call.1} parent=11 // pred_check_branch
          %126 = sbr.rel (%p124) target = $region20
        $region19: #{tpu_custom_call.1} parent=11 // pred_region
          _
        $region20: #{tpu_custom_call.1} parent=11 // pred_fallthru
          _
      $region12: #{tpu_custom_call.1} parent=5 // pred_fallthru
        _
      %p127 = scmp.lt.s32.totalorder %s12, 2
      // Predicated region
      $region21: #{tpu_custom_call.1} parent=5 // pred_check
        %p128 = pneg %p127
      $region22: #{tpu_custom_call.1} parent=5 // pred_check_branch
        %130 = sbr.rel (%p128) target = $region24
      $region23: #{tpu_custom_call.1} parent=5 // pred_region
        // Predicated region
        $region25: #{tpu_custom_call.1} parent=23 // pred_check
          %p131 = pneg %p32
        $region26: #{tpu_custom_call.1} parent=23 // pred_check_branch
          %133 = sbr.rel (%p131) target = $region28
        $region27: #{tpu_custom_call.1} parent=23 // pred_region
          %s134 = smul.u32 8, %s12
          %p135 = scmp.lt.s32.totalorder %s134, 15
          %s136 = scalar_select %p135, %s134, 15
          %s137 = smul.addr %s136, 4
          %s138 = scalar_lea.vmem %s0, %s137
          %s139 = smul.u32 8, %s12
        $region28: #{tpu_custom_call.1} parent=23 // pred_fallthru
          _
      $region24: #{tpu_custom_call.1} parent=5 // pred_fallthru
        _
      %p140 = scmp.le.s32.totalorder 1, %s12
      %p141 = scmp.lt.s32.totalorder %s12, 3
      %p142 = pnand %p140, %p141
      %p143 = pneg %p142
      // Predicated region
      $region29: #{tpu_custom_call.1} parent=5 // pred_check
        _
      $region30: #{tpu_custom_call.1} parent=5 // pred_check_branch
        %145 = sbr.rel (%p142) target = $region32
      $region31: #{tpu_custom_call.1} parent=5 // pred_region
        %s146 = ssub.s32 %s12, 1
        %s147 = smul.u32 8, %s17
        %p148 = scmp.lt.s32.totalorder %s147, 15
        %s149 = scalar_select %p148, %s147, 15
        %s150 = smul.addr %s149, 4
        %s151 = scalar_lea.vmem %s0, %s150
        %p152 = pneg %p38
        %p153 = pneg %p35
        %p154 = pneg %p59
        %p155 = pneg %p56
        %p156 = pneg %p80
        %p157 = pneg %p77
        %p158 = pneg %p106
        %p159 = pneg %p103
        %s160 = sand.u32 %s93, 1
        %s161 = scalar_lea.sflag [#allocation3], %s160
        %s162 = sand.u32 %s93, 1
        %s163 = smul.addr %s162, 32
        %s164 = scalar_lea.vmem [#allocation2], %s163
        %s165 = smul.u32 8, %s17
        %p166 = scmp.lt.s32.totalorder %s165, 15
        %s167 = scalar_select %p166, %s165, 15
        %s168 = smul.addr %s167, 4
        %s169 = scalar_lea.vmem %s0, %s168
        %s170 = smul.u32 8, %s17
        %s171 = smul.u32 8, %s17
        %v173 = vld [vmem:[%s169] sm:$0xf]
        %v174 = vld [vmem:[%s169 + $0x4] sm:$0xf]
        %v175 = vld [vmem:[%s169 + $0x8] sm:$0xf]
        %v176 = vld [vmem:[%s169 + $0xc] sm:$0xf]
        %v177 = vld [vmem:[%s169 + $0x10] sm:$0xf]
        %v178 = vld [vmem:[%s169 + $0x14] sm:$0xf]
        %v179 = vld [vmem:[%s169 + $0x18] sm:$0xf]
        %v180 = vld [vmem:[%s169 + $0x1c] sm:$0xf]
        %v181 = vld [vmem:[%s1] sm:$0xf]
        %v182 = vld [vmem:[%s1 + $0x4] sm:$0x3]
        %v183 = vld [vmem:[%s2] sm:$0x1]
        %v185 = vlaneseq
        %v186 = vshrl.u32 %v185, 7
        %v187 = vsub.s32 0, %v186
        %v188 = vrot.slane %v183, %v187
        %v198 = vunpack.c.l.b16 %v173
        %v199 = vunpack.c.l.b16 %v174
        %v200 = vunpack.c.l.b16 %v175
        %v201 = vunpack.c.l.b16 %v176
        %v202 = vunpack.c.l.b16 %v177
        %v203 = vunpack.c.l.b16 %v178
        %v204 = vunpack.c.l.b16 %v179
        %v205 = vunpack.c.l.b16 %v180
        %v206 = vpack.c.b16 %v199, %v198
        %v207 = vpack.c.b16 %v201, %v200
        %v208 = vpack.c.b16 %v203, %v202
        %v209 = vpack.c.b16 %v205, %v204
        %v212 = vunpack.c.l.b16 %v181
        %v213 = vunpack.c.l.b16 %v182
        %v214 = vpack.c.b16 %v213, %v212
        %vm215 = vcmask 97280
        %v217 = vsel %vm215, %v206, 0
        %v220 = vsel %vm215, %v207, 0
        %v223 = vsel %vm215, %v208, 0
        %v226 = vsel %vm215, %v209, 0
        %vm228 = vcmask 1045504
        %v230 = vsel %vm228, %v214, 0
        %232 = vmatprep.subr.bf16.mxu0 0
        %233 = vmatpush1.bf16.msra.mxu0 %v230
        %234 = vmatprep.subr.bf16.mxu0 0
        %235 = vmatpush1.bf16.msra.mxu0 0
        %236 = vmatprep.subr.bf16.mxu0 0
        %237 = vmatpush1.bf16.msra.mxu0 0
        %238 = vmatprep.subr.bf16.mxu0 0
        %239 = vmatpush1.bf16.msra.mxu0 0
        %240 = vmatprep.subr.bf16.mxu0 0
        %241 = vmatpush1.bf16.msra.mxu0 0
        %242 = vmatprep.subr.bf16.mxu0 0
        %243 = vmatpush1.bf16.msra.mxu0 0
        %244 = vmatprep.subr.bf16.mxu0 0
        %245 = vmatpush1.bf16.msra.mxu0 0
        %246 = vmatprep.subr.bf16.mxu0 0
        %247 = vmatpush1.bf16.msra.mxu0 0
        %248 = vmatprep.subr.bf16.mxu0 0
        %249 = vmatpush1.bf16.msra.mxu0 0
        %250 = vmatprep.subr.bf16.mxu0 0
        %251 = vmatpush1.bf16.msra.mxu0 0
        %252 = vmatprep.subr.bf16.mxu0 0
        %253 = vmatpush1.bf16.msra.mxu0 0
        %254 = vmatprep.subr.bf16.mxu0 0
        %255 = vmatpush1.bf16.msra.mxu0 0
        %256 = vmatprep.subr.bf16.mxu0 0
        %257 = vmatpush1.bf16.msra.mxu0 0
        %258 = vmatprep.subr.bf16.mxu0 0
        %259 = vmatpush1.bf16.msra.mxu0 0
        %260 = vmatprep.subr.bf16.mxu0 0
        %261 = vmatpush1.bf16.msra.mxu0 0
        %262 = vmatprep.subr.bf16.mxu0 0
        %263 = vmatpush1.bf16.msra.mxu0 0
        %264 = vmatprep.mubr.bf16.mxu0 0
        %265 = vmatmul.mubr.bf16.gmra.mrb[0].mxu0 %v217
        %v266 = vpop.f32.mrb[0].mxu0
        %v267 = vadd.f32 %v188, %v266
        %v268 = vpop.f32.mrb[0].mxu0
        %v269 = vpop.f32.mrb[0].mxu0
        %v270 = vadd.f32 %v188, %v269
        %v271 = vpop.f32.mrb[0].mxu0
        %272 = vmatprep.mubr.bf16.mxu0 0
        %273 = vmatmul.mubr.bf16.gmra.mrb[0].mxu0 %v220
        %v274 = vpop.f32.mrb[0].mxu0
        %v275 = vadd.f32 %v188, %v274
        %v276 = vpop.f32.mrb[0].mxu0
        %v277 = vpop.f32.mrb[0].mxu0
        %v278 = vadd.f32 %v188, %v277
        %v279 = vpop.f32.mrb[0].mxu0
        %280 = vmatprep.mubr.bf16.mxu0 0
        %281 = vmatmul.mubr.bf16.gmra.mrb[0].mxu0 %v223
        %v282 = vpop.f32.mrb[0].mxu0
        %v283 = vadd.f32 %v188, %v282
        %v284 = vpop.f32.mrb[0].mxu0
        %v285 = vpop.f32.mrb[0].mxu0
        %v286 = vadd.f32 %v188, %v285
        %v287 = vpop.f32.mrb[0].mxu0
        %288 = vmatprep.mubr.bf16.mxu0 0
        %289 = vmatmul.mubr.bf16.gmra.mrb[0].mxu0 %v226
        %v290 = vpop.f32.mrb[0].mxu0
        %v291 = vadd.f32 %v188, %v290
        %v292 = vpop.f32.mrb[0].mxu0
        %v293 = vpop.f32.mrb[0].mxu0
        %v294 = vadd.f32 %v188, %v293
        %v295 = vpop.f32.mrb[0].mxu0
        %296 = vdwg.mxu0
        %v297 = vpack.c.bf16 %v270, %v267
        %v298 = vpack.c.bf16 %v278, %v275
        %v299 = vpack.c.bf16 %v286, %v283
        %v300 = vpack.c.bf16 %v294, %v291
        %v305 = vunpack.c.l.b16 %v297
        %v306 = vunpack.c.h.b16 %v297
        %v307 = vunpack.c.l.b16 %v298
        %v308 = vunpack.c.h.b16 %v298
        %v309 = vunpack.c.l.b16 %v299
        %v310 = vunpack.c.h.b16 %v299
        %v311 = vunpack.c.l.b16 %v300
        %v312 = vunpack.c.h.b16 %v300
        %v313 = vpack.c.b16 %v305, %v305
        %v314 = vpack.c.b16 %v306, %v306
        %v315 = vpack.c.b16 %v307, %v307
        %v316 = vpack.c.b16 %v308, %v308
        %v317 = vpack.c.b16 %v309, %v309
        %v318 = vpack.c.b16 %v310, %v310
        %v319 = vpack.c.b16 %v311, %v311
        %v320 = vpack.c.b16 %v312, %v312
        %329 = vst [vmem:[%s164] sm:$0xf] %v313
        %330 = vst [vmem:[%s164 + $0x4] sm:$0xf] %v314
        %331 = vst [vmem:[%s164 + $0x8] sm:$0xf] %v315
        %332 = vst [vmem:[%s164 + $0xc] sm:$0xf] %v316
        %333 = vst [vmem:[%s164 + $0x10] sm:$0xf] %v317
        %334 = vst [vmem:[%s164 + $0x14] sm:$0xf] %v318
        %335 = vst [vmem:[%s164 + $0x18] sm:$0xf] %v319
        %336 = vst [vmem:[%s164 + $0x1c] sm:$0xf] %v320
        %s337 = sand.u32 %s93, 1
        %s338 = scalar_lea.sflag [#allocation3], %s337
        %s339 = sand.u32 %s93, 1
        %s340 = smul.addr %s339, 32
        %s341 = scalar_lea.vmem [#allocation2], %s340
        // Predicated region
        $region33: #{tpu_custom_call.1} parent=31 // pred_check
          %p342 = pneg %p103
        $region34: #{tpu_custom_call.1} parent=31 // pred_check_branch
          %344 = sbr.rel (%p342) target = $region36
        $region35: #{tpu_custom_call.1} parent=31 // pred_region
          %s345 = smul.u32 8, %s17
          %s347 = ssub.s32 512, 512
          %348 = vsyncadd %s338, %s347
          %s349 = smul.addr %s345, 64
          %s350 = scalar_lea.hbm %s3, %s349
          %s351 = sshll.u32 %s341, 4
          %s352 = int_to_ptr.vmem [resolvable:$true] %s351
          %357 = dma.vmem_to_hbm [thread:$0]  %s352, 512, %s350, %s338, 64, 64, 4
        $region36: #{tpu_custom_call.1} parent=31 // pred_fallthru
          _
      $region32: #{tpu_custom_call.1} parent=5 // pred_fallthru
        _
      %p358 = scmp.le.s32.totalorder 2, %s12
      // Predicated region
      $region37: #{tpu_custom_call.1} parent=5 // pred_check
        %p359 = pneg %p358
      $region38: #{tpu_custom_call.1} parent=5 // pred_check_branch
        %361 = sbr.rel (%p359) target = $region40
      $region39: #{tpu_custom_call.1} parent=5 // pred_region
        %s362 = ssub.s32 %s12, 2
        // Predicated region
        $region41: #{tpu_custom_call.1} parent=39 // pred_check
          %p363 = pneg %p109
        $region42: #{tpu_custom_call.1} parent=39 // pred_check_branch
          %365 = sbr.rel (%p363) target = $region44
        $region43: #{tpu_custom_call.1} parent=39 // pred_region
          %s366 = sand.u32 %s94, 1
          %s367 = scalar_lea.sflag [#allocation3], %s366
          %s368 = sand.u32 %s94, 1
          %s369 = smul.addr %s368, 32
          %s370 = scalar_lea.vmem [#allocation2], %s369
          %371 = dma.done %s367, 512
        $region44: #{tpu_custom_call.1} parent=39 // pred_fallthru
          _
      $region40: #{tpu_custom_call.1} parent=5 // pred_fallthru
        _
    $region6: #{tpu_custom_call.1} parent=1 // loop_footer
      %s16 = sadd.s32 1, %s12
    $region7: #{tpu_custom_call.1} parent=1 // loop_footer_branch
      %11 = sbr.rel target = $region3
    $region8: #{tpu_custom_call.1} parent=1 // loop_exit
      _
    %372 = vsyncpa [#allocation3], 1
    %s373 = scalar_lea.sflag [#allocation3], 1
    %374 = vsyncpa %s373, 1

</llo_original>
